<compile_context>
chip_gen: v7x
topology: tpu7x:2x2x1
jax: 0.10.0
libtpu: 0.0.40
codegen_flags: <defaults>
</compile_context>

<pallas_src>
import functools

import numpy as np
import jax
import jax.numpy as jnp
from jax.experimental import pallas as pl
from jax.experimental.pallas import tpu as pltpu

SIZES = (1, 3, 6, 8)
K = sum(s * s for s in SIZES)       # 110
KPAD = 128                          # lane-dense / MXU-width output (zero-padded cols)


def _round_up(x, m):
    return ((x + m - 1) // m) * m


@functools.lru_cache(maxsize=None)
def _pool_matrix(h, w, hw_pad):
    """(hw_pad, 128) f32 pooling matrix A; X_flat @ A reproduces AdaptiveAvgPool2d
    for each size in SIZES, flattened and concatenated. Rows >= h*w and columns
    >= K are zero padding."""
    A = np.zeros((hw_pad, KPAD), dtype=np.float32)
    col = 0
    for s in SIZES:
        for i in range(s):
            h0 = (i * h) // s
            h1 = -((-(i + 1) * h) // s)          # ceil((i+1)*h/s)
            for j in range(s):
                w0 = (j * w) // s
                w1 = -((-(j + 1) * w) // s)
                cnt = (h1 - h0) * (w1 - w0)
                for hh in range(h0, h1):
                    A[hh * w + w0:hh * w + w1, col] = 1.0 / cnt
                col += 1
    return A


def _vmem_info():
    """(usable budget, physical capacity) in bytes; safe fallback if query fails."""
    cap = 64 << 20                       # conservative default: v7x per-TC VMEM
    try:
        info = pltpu.get_tpu_info()
        cap = int(getattr(info, "vmem_capacity_bytes", cap)) or cap
    except Exception:
        pass
    return int(cap * 0.55), cap


def _vmem_limit(needed, cap):
    """Enough for our tiles (plus slack), never above ~90% of physical VMEM."""
    return int(min(int(cap * 0.9), max(32 << 20, needed + (8 << 20))))


def _choose_tm(rows, fits, cap_tm=1024):
    """Pick (tm, rows_pad): tm divides rows_pad, is a multiple of 8 (or equals the
    full row count), fits the VMEM budget, and prefers >= 2 row tiles so both v7x
    TensorCores get work on the 'parallel' axis."""
    if rows % 8 != 0 and rows <= cap_tm and fits(rows):
        return rows, rows                      # full-rows block, zero padding
    rows_pad = _round_up(rows, 8)
    cands = [d for d in range(8, min(rows_pad, cap_tm) + 1, 8)
             if rows_pad % d == 0 and fits(d)]
    if not cands:
        return None, rows_pad
    multi = [d for d in cands if rows_pad // d >= 2]
    return (max(multi) if multi else max(cands)), rows_pad


def _psp_kernel_single(x_ref, a_ref, o_ref):
    # One MXU dot per row tile; A is fully VMEM-resident (constant block index).
    o_ref[...] = jnp.dot(
        x_ref[...], a_ref[...], preferred_element_type=jnp.float32
    ).astype(o_ref.dtype)


def _psp_kernel_split(x_ref, a_ref, o_ref):
    # Fallback for very large h*w: contract over k tiles, accumulating directly
    # into o_ref (its block index is constant across k, so it stays resident).
    @pl.when(pl.program_id(1) == 0)
    def _():
        o_ref[...] = jnp.zeros_like(o_ref)

    o_ref[...] += jnp.dot(
        x_ref[...], a_ref[...], preferred_element_type=jnp.float32
    )


def psp_module(feats, use_bf16=False):
    """feats: (n, c, h, w) -> (n, c, 110) float32 (PSPModule forward)."""
    n, c, h, w = feats.shape
    rows, hw = n * c, h * w
    budget, cap = _vmem_info()
    in_dtype = jnp.bfloat16 if use_bf16 else jnp.float32
    isz = jnp.dtype(in_dtype).itemsize

    x2d = feats.reshape(rows, hw).astype(in_dtype)   # contiguous: no HBM copy for f32

    # ---------- main path: no contraction split, A resident in VMEM ----------
    def fits_single(tm):
        return (2 * tm * hw * isz            # double-buffered X tile
                + 2 * hw * KPAD * isz        # A (counted double-buffered, worst case)
                + 2 * tm * KPAD * 4          # double-buffered f32 output tile
                ) <= budget

    tm, rows_pad = _choose_tm(rows, fits_single)

    if tm is not None:
        a = jnp.asarray(_pool_matrix(h, w, hw), dtype=in_dtype)
        if rows_pad != rows:                 # rare: rows not a multiple of 8
            x2d = jnp.pad(x2d, ((0, rows_pad - rows), (0, 0)))
        needed = 2 * tm * hw * isz + 2 * hw * KPAD * isz + 2 * tm * KPAD * 4
        out2d = pl.pallas_call(
            _psp_kernel_single,
            out_shape=jax.ShapeDtypeStruct((rows_pad, KPAD), jnp.float32),
            grid_spec=pltpu.PrefetchScalarGridSpec(
                num_scalar_prefetch=0,
                grid=(rows_pad // tm,),
                in_specs=[
                    pl.BlockSpec((tm, hw), lambda i: (i, 0)),
                    pl.BlockSpec((hw, KPAD), lambda i: (0, 0)),   # fetched once
                ],
                out_specs=pl.BlockSpec((tm, KPAD), lambda i: (i, 0)),
            ),
            compiler_params=pltpu.CompilerParams(
                dimension_semantics=("parallel",),
                vmem_limit_bytes=_vmem_limit(needed, cap),
            ),
        )(x2d, a)
    else:
        # -------- fallback: split the h*w contraction (very large spatial) --------
        hw_pad = _round_up(hw, 128)

        def fits_split_tm(tm_):
            return (2 * tm_ * 128 * isz + 2 * 128 * KPAD * isz
                    + 2 * tm_ * KPAD * 4) <= budget

        tm, rows_pad = _choose_tm(rows, fits_split_tm)
        if tm is None:                       # pathological budget; minimal legal tile
            rows_pad, tm = _round_up(rows, 8), 8

        blocks = hw_pad // 128
        tk = 128
        for d in range(blocks, 0, -1):
            if blocks % d == 0 and (2 * tm * 128 * d * isz
                                    + 2 * 128 * d * KPAD * isz
                                    + 2 * tm * KPAD * 4) <= budget:
                tk = 128 * d
                break

        a = jnp.asarray(_pool_matrix(h, w, hw_pad), dtype=in_dtype)
        if rows_pad != rows or hw_pad != hw:
            x2d = jnp.pad(x2d, ((0, rows_pad - rows), (0, hw_pad - hw)))
        needed = 2 * tm * tk * isz + 2 * tk * KPAD * isz + 2 * tm * KPAD * 4
        out2d = pl.pallas_call(
            _psp_kernel_split,
            out_shape=jax.ShapeDtypeStruct((rows_pad, KPAD), jnp.float32),
            grid_spec=pltpu.PrefetchScalarGridSpec(
                num_scalar_prefetch=0,
                grid=(rows_pad // tm, hw_pad // tk),
                in_specs=[
                    pl.BlockSpec((tm, tk), lambda i, k: (i, k)),
                    pl.BlockSpec((tk, KPAD), lambda i, k: (k, 0)),
                ],
                out_specs=pl.BlockSpec((tm, KPAD), lambda i, k: (i, 0)),
            ),
            compiler_params=pltpu.CompilerParams(
                dimension_semantics=("parallel", "arbitrary"),
                vmem_limit_bytes=_vmem_limit(needed, cap),
            ),
        )(x2d, a)

    return out2d[:rows, :K].reshape(n, c, K)


def _reference(feats):
    """NumPy reference of the PyTorch forward (adaptive avg pool per size)."""
    n, c, h, w = feats.shape
    f = np.asarray(feats, dtype=np.float32)
    outs = []
    for s in SIZES:
        pooled = np.zeros((n, c, s, s), dtype=np.float32)
        for i in range(s):
            h0, h1 = (i * h) // s, -((-(i + 1) * h) // s)
            for j in range(s):
                w0, w1 = (j * w) // s, -((-(j + 1) * w) // s)
                pooled[:, :, i, j] = f[:, :, h0:h1, w0:w1].mean(axis=(2, 3))
        outs.append(pooled.reshape(n, c, -1))
    return np.concatenate(outs, axis=-1)


if __name__ == "__main__":
    key = jax.random.PRNGKey(0)
    x = jax.random.normal(key, (2, 4, 16, 16), dtype=jnp.float32)

    out = psp_module(x)
    jax.block_until_ready(out)

    ref = _reference(x)
    assert out.shape == (2, 4, K), out.shape
    np.testing.assert_allclose(np.asarray(out), ref, rtol=1e-5, atol=1e-5)

    print("KERNEL_OK")
</pallas_src>

<mosaic_0001>
module attributes {stable_mosaic.version = 11 : i64} {
  func.func @_psp_kernel_single(%arg0: i32, %arg1: memref<8x256xf32, #tpu.memory_space<vmem>>, %arg2: memref<256x128xf32, #tpu.memory_space<vmem>>, %arg3: memref<8x128xf32, #tpu.memory_space<vmem>>) attributes {dimension_semantics = [#tpu.dimension_semantics<parallel>], iteration_bounds = array<i64: 1>, scalar_prefetch = 0 : i64, scratch_operands = 0 : i64, tpu.core_type = #tpu.core_type<tc>, window_params = [{transform_indices = @transform_0, window_bounds = array<i64: 8, 256>}, {pipeline_mode = #tpu.pipeline_mode<synchronous>, transform_indices = @transform_1, window_bounds = array<i64: 256, 128>}, {transform_indices = @transform_2, window_bounds = array<i64: 8, 128>}]} {
    %c0 = arith.constant 0 : index
    %c0_0 = arith.constant 0 : index
    %0 = vector.load %arg1[%c0, %c0_0] : memref<8x256xf32, #tpu.memory_space<vmem>>, vector<8x256xf32>
    %c0_1 = arith.constant 0 : index
    %c0_2 = arith.constant 0 : index
    %1 = vector.load %arg2[%c0_1, %c0_2] : memref<256x128xf32, #tpu.memory_space<vmem>>, vector<256x128xf32>
    %cst = arith.constant dense<0.000000e+00> : vector<8x128xf32>
    %2 = tpu.matmul %0, %1, %cst {dimension_numbers = #tpu.dot_dimension_numbers<[1], [0], [0], [1], [0, 0, 1, 1], [], []>} : vector<8x256xf32>, vector<256x128xf32>, vector<8x128xf32> -> vector<8x128xf32>
    %c0_3 = arith.constant 0 : index
    %c0_4 = arith.constant 0 : index
    %3 = vector.load %arg3[%c0_3, %c0_4] : memref<8x128xf32, #tpu.memory_space<vmem>>, vector<8x128xf32>
    tpu.vector_store %arg3[%c0_3, %c0_4], %2 {strides = array<i32>} : memref<8x128xf32, #tpu.memory_space<vmem>>, vector<8x128xf32>,
    return
  }
  func.func @transform_0(%arg0: i32) -> (i32, i32) {
    %c0_i32 = arith.constant 0 : i32
    %c0_i32_0 = arith.constant 0 : i32
    return %arg0, %c0_i32 : i32, i32
  }
  func.func @transform_1(%arg0: i32) -> (i32, i32) {
    %c0_i32 = arith.constant 0 : i32
    %c0_i32_0 = arith.constant 0 : i32
    %c0_i32_1 = arith.constant 0 : i32
    return %c0_i32, %c0_i32_0 : i32, i32
  }
  func.func @transform_2(%arg0: i32) -> (i32, i32) {
    %c0_i32 = arith.constant 0 : i32
    %c0_i32_0 = arith.constant 0 : i32
    return %arg0, %c0_i32 : i32, i32
  }
}

</mosaic_0001>

<llo_original>
// kernel: tpu_custom_call.1
$region0: #{tpu_custom_call.1}
  #allocation0 [shape = 'u32[]', space=smem, size = 0x4, offset = 0x4, fixed_abs, tag = 'smem constant byte address 0x4 - core index']
  #allocation1 [shape = 'u32[144,128]{1,0:T(1,128)}', space=vmem, size = 0x12000, scoped, tag = 'internal scratch']
  %s0 = inlined_call_operand.hbm [shape: f32[8,256], index: 0, kind: input, shape index: {}]
  %s1 = inlined_call_operand.hbm [shape: f32[256,128], index: 1, kind: input, shape index: {}]
  %s2 = inlined_call_operand.hbm [shape: f32[8,128], index: 2, kind: output, shape index: {}]
  %s3 = sld [smem:[#allocation0]]
  $region26: #{tpu_custom_call.1} parent=0
    _
  %s5 = ssub.s32 1, %s3
  %s6 = scalar_select 0, %s5, %s3
  $region1: #{tpu_custom_call.1} parent=0
    #allocation2 [shape = 'u8[8192]{0}', space=vmem, size = 0x2000, scoped, tag = 'input window, operand 0, single buffered']
    #allocation3 [shape = 's32[1]{0}', space=sflag, size = 0x4, scoped, tag = 'scoped memory for tpu_custom_call.1']
    #allocation4 [shape = 's32[1]{0}', space=sflag, size = 0x4, scoped, tag = 'scoped memory for tpu_custom_call.1']
    #allocation5 [shape = 'u8[131072]{0}', space=vmem, size = 0x20000, scoped, tag = 'input window, operand 1, single buffered']
    #allocation6 [shape = 's32[1]{0}', space=sflag, size = 0x4, scoped, tag = 'scoped memory for tpu_custom_call.1']
    #allocation7 [shape = 'u8[4096]{0}', space=vmem, size = 0x1000, scoped, tag = 'output window, operand 0, single buffered']
    %7 = vsyncpa [#allocation3], 0
    %8 = vsyncpa [#allocation6], 0
    %9 = vsyncpa [#allocation4], 0
    // Predicated region
    $region2: #{tpu_custom_call.1} parent=1 // pred_check
      _
    $region3: #{tpu_custom_call.1} parent=1 // pred_check_branch
      %11 = sbr.rel (0) target = $region5
    $region4: #{tpu_custom_call.1} parent=1 // pred_region
      %s13 = ssub.s32 256, 256
      %14 = vsyncadd [#allocation3], %s13
      %s16 = sshll.u32 [#allocation2], 4
      %s17 = int_to_ptr.vmem [resolvable:$true] %s16
      %19 = dma.hbm_to_vmem [thread:$0]  %s0, 256, %s17, [#allocation3]
    $region5: #{tpu_custom_call.1} parent=1 // pred_fallthru
      _
    // Predicated region
    $region6: #{tpu_custom_call.1} parent=1 // pred_check
      _
    $region7: #{tpu_custom_call.1} parent=1 // pred_check_branch
      %21 = sbr.rel (0) target = $region9
    $region8: #{tpu_custom_call.1} parent=1 // pred_region
      %s23 = ssub.s32 4096, 4096
      %24 = vsyncadd [#allocation6], %s23
      %s25 = sshll.u32 [#allocation5], 4
      %s26 = int_to_ptr.vmem [resolvable:$true] %s25
      %31 = dma.hbm_to_vmem [thread:$0]  %s1, 4096, %s26, [#allocation6], 128, 128, 8
    $region9: #{tpu_custom_call.1} parent=1 // pred_fallthru
      _
    // Predicated region
    $region10: #{tpu_custom_call.1} parent=1 // pred_check
      _
    $region11: #{tpu_custom_call.1} parent=1 // pred_check_branch
      %33 = sbr.rel (0) target = $region13
    $region12: #{tpu_custom_call.1} parent=1 // pred_region
      %34 = dma.done [#allocation3], 256
    $region13: #{tpu_custom_call.1} parent=1 // pred_fallthru
      _
    // Predicated region
    $region14: #{tpu_custom_call.1} parent=1 // pred_check
      _
    $region15: #{tpu_custom_call.1} parent=1 // pred_check_branch
      %36 = sbr.rel (0) target = $region17
    $region16: #{tpu_custom_call.1} parent=1 // pred_region
      %37 = dma.done [#allocation6], 4096
    $region17: #{tpu_custom_call.1} parent=1 // pred_fallthru
      _
    %v38 = vld [vmem:[#allocation2] sm:$0xff]
    %v39 = vld [vmem:[#allocation2 + $0x8] sm:$0xff]
    %v40 = vld [vmem:[#allocation5] sm:$0xff]
    %v41 = vld [vmem:[#allocation5 + $0x8] sm:$0xff]
    %v42 = vld [vmem:[#allocation5 + $0x10] sm:$0xff]
    %v43 = vld [vmem:[#allocation5 + $0x18] sm:$0xff]
    %v44 = vld [vmem:[#allocation5 + $0x20] sm:$0xff]
    %v45 = vld [vmem:[#allocation5 + $0x28] sm:$0xff]
    %v46 = vld [vmem:[#allocation5 + $0x30] sm:$0xff]
    %v47 = vld [vmem:[#allocation5 + $0x38] sm:$0xff]
    %v48 = vld [vmem:[#allocation5 + $0x40] sm:$0xff]
    %v49 = vld [vmem:[#allocation5 + $0x48] sm:$0xff]
    %v50 = vld [vmem:[#allocation5 + $0x50] sm:$0xff]
    %v51 = vld [vmem:[#allocation5 + $0x58] sm:$0xff]
    %v52 = vld [vmem:[#allocation5 + $0x60] sm:$0xff]
    %v53 = vld [vmem:[#allocation5 + $0x68] sm:$0xff]
    %v54 = vld [vmem:[#allocation5 + $0x70] sm:$0xff]
    %v55 = vld [vmem:[#allocation5 + $0x78] sm:$0xff]
    %v56 = vld [vmem:[#allocation5 + $0x80] sm:$0xff]
    %v57 = vld [vmem:[#allocation5 + $0x88] sm:$0xff]
    %v58 = vld [vmem:[#allocation5 + $0x90] sm:$0xff]
    %v59 = vld [vmem:[#allocation5 + $0x98] sm:$0xff]
    %v60 = vld [vmem:[#allocation5 + $0xa0] sm:$0xff]
    %v61 = vld [vmem:[#allocation5 + $0xa8] sm:$0xff]
    %v62 = vld [vmem:[#allocation5 + $0xb0] sm:$0xff]
    %v63 = vld [vmem:[#allocation5 + $0xb8] sm:$0xff]
    %v64 = vld [vmem:[#allocation5 + $0xc0] sm:$0xff]
    %v65 = vld [vmem:[#allocation5 + $0xc8] sm:$0xff]
    %v66 = vld [vmem:[#allocation5 + $0xd0] sm:$0xff]
    %v67 = vld [vmem:[#allocation5 + $0xd8] sm:$0xff]
    %v68 = vld [vmem:[#allocation5 + $0xe0] sm:$0xff]
    %v69 = vld [vmem:[#allocation5 + $0xe8] sm:$0xff]
    %v70 = vld [vmem:[#allocation5 + $0xf0] sm:$0xff]
    %v71 = vld [vmem:[#allocation5 + $0xf8] sm:$0xff]
    %72 = vmatprep.subr.mxu0 0.0
    %73 = vmatpush1.msra.mxu0 %v40
    %74 = vmatprep.subr.mxu0 0.0
    %75 = vmatpush1.msra.mxu0 %v41
    %76 = vmatprep.subr.mxu0 0.0
    %77 = vmatpush1.msra.mxu0 %v42
    %78 = vmatprep.subr.mxu0 0.0
    %79 = vmatpush1.msra.mxu0 %v43
    %80 = vmatprep.subr.mxu0 0.0
    %81 = vmatpush1.msra.mxu0 %v44
    %82 = vmatprep.subr.mxu0 0.0
    %83 = vmatpush1.msra.mxu0 %v45
    %84 = vmatprep.subr.mxu0 0.0
    %85 = vmatpush1.msra.mxu0 %v46
    %86 = vmatprep.subr.mxu0 0.0
    %87 = vmatpush1.msra.mxu0 %v47
    %88 = vmatprep.subr.mxu0 0.0
    %89 = vmatpush1.msra.mxu0 %v48
    %90 = vmatprep.subr.mxu0 0.0
    %91 = vmatpush1.msra.mxu0 %v49
    %92 = vmatprep.subr.mxu0 0.0
    %93 = vmatpush1.msra.mxu0 %v50
    %94 = vmatprep.subr.mxu0 0.0
    %95 = vmatpush1.msra.mxu0 %v51
    %96 = vmatprep.subr.mxu0 0.0
    %97 = vmatpush1.msra.mxu0 %v52
    %98 = vmatprep.subr.mxu0 0.0
    %99 = vmatpush1.msra.mxu0 %v53
    %100 = vmatprep.subr.mxu0 0.0
    %101 = vmatpush1.msra.mxu0 %v54
    %102 = vmatprep.subr.mxu0 0.0
    %103 = vmatpush1.msra.mxu0 %v55
    %104 = vmatprep.subr.mxu0 0.0
    %105 = vmatpush1.msra.mxu0 %v56
    %106 = vmatprep.subr.mxu0 0.0
    %107 = vmatpush1.msra.mxu0 %v57
    %108 = vmatprep.subr.mxu0 0.0
    %109 = vmatpush1.msra.mxu0 %v58
    %110 = vmatprep.subr.mxu0 0.0
    %111 = vmatpush1.msra.mxu0 %v59
    %112 = vmatprep.subr.mxu0 0.0
    %113 = vmatpush1.msra.mxu0 %v60
    %114 = vmatprep.subr.mxu0 0.0
    %115 = vmatpush1.msra.mxu0 %v61
    %116 = vmatprep.subr.mxu0 0.0
    %117 = vmatpush1.msra.mxu0 %v62
    %118 = vmatprep.subr.mxu0 0.0
    %119 = vmatpush1.msra.mxu0 %v63
    %120 = vmatprep.subr.mxu0 0.0
    %121 = vmatpush1.msra.mxu0 %v64
    %122 = vmatprep.subr.mxu0 0.0
    %123 = vmatpush1.msra.mxu0 %v65
    %124 = vmatprep.subr.mxu0 0.0
    %125 = vmatpush1.msra.mxu0 %v66
    %126 = vmatprep.subr.mxu0 0.0
    %127 = vmatpush1.msra.mxu0 %v67
    %128 = vmatprep.subr.mxu0 0.0
    %129 = vmatpush1.msra.mxu0 %v68
    %130 = vmatprep.subr.mxu0 0.0
    %131 = vmatpush1.msra.mxu0 %v69
    %132 = vmatprep.subr.mxu0 0.0
    %133 = vmatpush1.msra.mxu0 %v70
    %134 = vmatprep.subr.mxu0 0.0
    %135 = vmatpush1.msra.mxu0 %v71
    %136 = vmatprep.mubr.f32.mxu0 %v39
    %137 = vmatmul.mubr.f32.gmra.mrb[0].mxu0 %v38
    %v138 = vpop.f32.mrb[0].mxu0
    %v139 = vadd.f32 0.0, %v138
    %v140 = vpop.f32.mrb[0].mxu0
    %141 = vdwg.mxu0
    %142 = vst [vmem:[#allocation7] sm:$0xff] %v139
    // Predicated region
    $region18: #{tpu_custom_call.1} parent=1 // pred_check
      _
    $region19: #{tpu_custom_call.1} parent=1 // pred_check_branch
      %144 = sbr.rel (0) target = $region21
    $region20: #{tpu_custom_call.1} parent=1 // pred_region
      %s146 = ssub.s32 128, 128
      %147 = vsyncadd [#allocation4], %s146
      %s149 = sshll.u32 [#allocation7], 4
      %s150 = int_to_ptr.vmem [resolvable:$true] %s149
      %152 = dma.vmem_to_hbm [thread:$0]  %s150, 128, %s2, [#allocation4]
    $region21: #{tpu_custom_call.1} parent=1 // pred_fallthru
      _
    // Predicated region
    $region22: #{tpu_custom_call.1} parent=1 // pred_check
      _
    $region23: #{tpu_custom_call.1} parent=1 // pred_check_branch
      %154 = sbr.rel (0) target = $region25
    $region24: #{tpu_custom_call.1} parent=1 // pred_region
      %155 = dma.done [#allocation4], 128
    $region25: #{tpu_custom_call.1} parent=1 // pred_fallthru
      _
    %156 = vsyncpa [#allocation3], 1
    %157 = vsyncpa [#allocation6], 1
    %158 = vsyncpa [#allocation4], 1

</llo_original>
